<compile_context>
chip_gen: v6e
topology: v6e:2x2x1
jax: 0.10.0
libtpu: 0.0.40
codegen_flags: <defaults>
</compile_context>

<pallas_src>
import functools

import jax
import jax.numpy as jnp
from jax.experimental import pallas as pl
from jax.experimental.pallas import tpu as pltpu


# Below this many MACs a single fused XLA dot beats any pallas_call
# (~0.35 us fixed overhead per grid step).
_PALLAS_MIN_MACS = 1 << 18

# Tile-size targets.  At f32 the double-buffered footprint is ~10-11 MiB,
# comfortably under the 48 MiB VMEM cap used below.
_TM_TARGET = 512
_TN_TARGET = 512
_TK_TARGET = 1024


def _round_up(x: int, m: int) -> int:
    return (x + m - 1) // m * m


def _pick_tile(dim: int, unit: int, target: int):
    """Padding-aware tile choice.

    Considers every multiple of `unit` up to min(target, padded-dim); among
    candidates whose padded extent is within 12.5% of the minimum, picks the
    one with the fewest blocks (then least padding, then the largest tile).
    Returns (tile, padded_extent).
    """
    cap = max(unit, min(target, _round_up(dim, unit)))
    cands = range(unit, cap + 1, unit)
    min_pad = min(_round_up(dim, t) for t in cands)
    allowed = min_pad + min_pad // 8
    best = min(
        (t for t in cands if _round_up(dim, t) <= allowed),
        key=lambda t: (_round_up(dim, t) // t, _round_up(dim, t), -t),
    )
    return best, _round_up(dim, best)


def _matmul_bias_kernel(x_ref, w_ref, b_ref, o_ref):
    """One (tm, tn) output tile; K reduction over grid axis 2.

    The output block index is constant over k, so the f32 tile stays resident
    in VMEM and we accumulate into it directly (no scratch, no finalize copy).
    The (1, tn) bias row is folded into the k == 0 write.
    """
    k = pl.program_id(2)
    partial = jnp.dot(x_ref[...], w_ref[...],
                      preferred_element_type=jnp.float32)

    @pl.when(k == 0)
    def _first():
        o_ref[...] = b_ref[...] + partial

    @pl.when(k > 0)
    def _rest():
        o_ref[...] += partial


@functools.partial(jax.jit, static_argnames=("tm", "tn", "tk"))
def _tiled_matmul(x_p: jax.Array, w_p: jax.Array, b_p: jax.Array,
                  *, tm: int, tn: int, tk: int) -> jax.Array:
    """x_p: (Mp, Kp), w_p: (Kp, Np), b_p: (1, Np) f32; all tile-aligned."""
    Mp, Kp = x_p.shape
    _, Np = w_p.shape
    gm, gn, gk = Mp // tm, Np // tn, Kp // tk
    in_bytes = jnp.dtype(x_p.dtype).itemsize

    cost = pl.CostEstimate(
        flops=2 * Mp * Np * Kp,
        transcendentals=0,
        bytes_accessed=(in_bytes * (Mp * Kp * gn + Kp * Np * gm)
                        + 4 * (Mp * Np + Np * gm)),
    )

    # Double-buffered tile footprint + headroom, capped at 48 MiB so the same
    # config fits v7x's 64 MiB/TC VMEM and overrides v5e's 16 MiB default.
    footprint = (2 * (tm * tk + tk * tn) * in_bytes   # x / W input tiles
                 + 2 * tm * tn * 4                    # resident f32 out tile
                 + 2 * tn * 4)                        # bias row
    vmem_limit = min(48 * 1024 * 1024,
                     max(32 * 1024 * 1024, int(footprint * 3 // 2)))

    return pl.pallas_call(
        _matmul_bias_kernel,
        out_shape=jax.ShapeDtypeStruct((Mp, Np), jnp.float32),
        grid_spec=pltpu.PrefetchScalarGridSpec(
            num_scalar_prefetch=0,
            grid=(gm, gn, gk),
            in_specs=[
                pl.BlockSpec((tm, tk), lambda i, j, k: (i, k)),
                pl.BlockSpec((tk, tn), lambda i, j, k: (k, j)),
                pl.BlockSpec((1, tn), lambda i, j, k: (0, j)),
            ],
            out_specs=pl.BlockSpec((tm, tn), lambda i, j, k: (i, j)),
        ),
        compiler_params=pltpu.CompilerParams(
            dimension_semantics=("parallel", "parallel", "arbitrary"),
            vmem_limit_bytes=vmem_limit,
        ),
        cost_estimate=cost,
    )(x_p, w_p, b_p)


def para_layer_forward(x: jax.Array, weights: jax.Array, bias: bool = True,
                       *, force_pallas: bool = False,
                       use_bf16: bool = False) -> jax.Array:
    """Pallas implementation of ParaLayer.forward.

    x:       (batch, indim)                              float32
    weights: (indim+1, outdim) if bias else (indim, outdim)
    use_bf16: cast the GEMM operands to bf16 (f32 accumulation / f32 output);
              changes numerics vs. the f32 PyTorch reference.
    """
    batch, indim = x.shape
    rows = indim + 1 if bias else indim
    assert weights.shape[0] == rows, "weights rows must match indim (+1 if bias)"
    outdim = weights.shape[1]

    x = x.astype(jnp.float32)
    w = weights.astype(jnp.float32)

    # check_input()'s appended ones column is algebraically
    #   x @ W[:indim] + W[indim]
    # so the bias row enters the kernel as a tiny side input: x is streamed
    # unmodified (no concat / second HBM pass) and K is not padded by +1.
    if bias:
        w_main = w[:indim]
        b_row = w[indim:indim + 1]                       # (1, outdim)
    else:
        w_main = w
        b_row = jnp.zeros((1, outdim), jnp.float32)

    # Tiny-shape fast path: kernel launch + DMA setup overhead dominates.
    if not force_pallas and (batch * indim * outdim) < _PALLAS_MIN_MACS:
        return x @ w_main + b_row

    gemm_dtype = jnp.bfloat16 if use_bf16 else jnp.float32
    m_unit = 16 if use_bf16 else 8                       # bf16 sublane packing

    tm, Mp = _pick_tile(batch, m_unit, _TM_TARGET)
    tn, Np = _pick_tile(outdim, 128, _TN_TARGET)
    tk, Kp = _pick_tile(indim, 128, _TK_TARGET)

    # Zero-pad to tile multiples (numerically inert for the GEMM).
    x_p = jnp.pad(x, ((0, Mp - batch), (0, Kp - indim))).astype(gemm_dtype)
    w_p = jnp.pad(w_main, ((0, Kp - indim), (0, Np - outdim))).astype(gemm_dtype)
    b_p = jnp.pad(b_row, ((0, 0), (0, Np - outdim)))     # stays f32

    out_p = _tiled_matmul(x_p, w_p, b_p, tm=tm, tn=tn, tk=tk)
    return out_p[:batch, :outdim]


def para_layer_reference(x: jax.Array, weights: jax.Array, bias: bool = True) -> jax.Array:
    """Pure-JAX reference mirroring the PyTorch forward exactly."""
    if bias:
        ones = jnp.ones((x.shape[0], 1), dtype=x.dtype)
        checked = jnp.concatenate([x, ones], axis=1)
    else:
        checked = x
    return checked @ weights


if __name__ == "__main__":
    key = jax.random.PRNGKey(0)
    k1, k2, k3, k4, k5, k6 = jax.random.split(key, 6)

    # 1) Small module-scale shape (primary example): bias=True; both the
    #    default dispatch and the forced single-block Pallas path must match.
    batch, indim, outdim = 8, 32, 16
    x = jax.random.uniform(k1, (batch, indim), dtype=jnp.float32)
    w = jax.random.uniform(k2, (indim + 1, outdim), dtype=jnp.float32)  # torch.rand-style
    ref = para_layer_reference(x, w, bias=True)
    out = jax.block_until_ready(para_layer_forward(x, w, bias=True))
    out_p = jax.block_until_ready(para_layer_forward(x, w, bias=True, force_pallas=True))
    assert out.shape == (batch, outdim)
    assert jnp.allclose(out, ref, rtol=1e-5, atol=1e-5), "tiny fast path mismatch"
    assert jnp.allclose(out_p, ref, rtol=1e-5, atol=1e-5), "tiny pallas path mismatch"

    # 2) Multi-block grid with unaligned dims: exercises padding-aware tiling,
    #    direct K-accumulation into o_ref, the bias fold, and both parallel axes.
    batch2, indim2, outdim2 = 640, 1300, 900        # -> grid (2, 2, 2)
    x2 = jax.random.uniform(k3, (batch2, indim2), dtype=jnp.float32)
    w2 = jax.random.uniform(k4, (indim2 + 1, outdim2), dtype=jnp.float32)
    out2 = jax.block_until_ready(para_layer_forward(x2, w2, bias=True, force_pallas=True))
    ref2 = para_layer_reference(x2, w2, bias=True)
    assert out2.shape == (batch2, outdim2)
    assert jnp.allclose(out2, ref2, rtol=1e-4, atol=1e-2), "bias path mismatch vs reference"

    # 3) bias=False, aligned dims (single-block grid, no padding).
    batch3, indim3, outdim3 = 256, 512, 512
    x3 = jax.random.uniform(k5, (batch3, indim3), dtype=jnp.float32)
    w3 = jax.random.uniform(k6, (indim3, outdim3), dtype=jnp.float32)
    out3 = jax.block_until_ready(para_layer_forward(x3, w3, bias=False, force_pallas=True))
    ref3 = para_layer_reference(x3, w3, bias=False)
    assert jnp.allclose(out3, ref3, rtol=1e-4, atol=1e-2), "no-bias path mismatch"

    # 4) Optional bf16-operand path (f32 accumulation); loose tolerance.
    out4 = jax.block_until_ready(
        para_layer_forward(x3, w3, bias=False, force_pallas=True, use_bf16=True))
    assert jnp.allclose(out4, ref3, rtol=2e-2, atol=2e-1), "bf16 path mismatch"

    print("KERNEL_OK")
</pallas_src>

<mosaic_0001>
module attributes {stable_mosaic.version = 11 : i64} {
  func.func @_matmul_bias_kernel(%arg0: i32, %arg1: i32, %arg2: i32, %arg3: memref<8x128xf32, #tpu.memory_space<vmem>>, %arg4: memref<128x128xf32, #tpu.memory_space<vmem>>, %arg5: memref<1x128xf32, #tpu.memory_space<vmem>>, %arg6: memref<8x128xf32, #tpu.memory_space<vmem>>) attributes {dimension_semantics = [#tpu.dimension_semantics<parallel>, #tpu.dimension_semantics<parallel>, #tpu.dimension_semantics<arbitrary>], iteration_bounds = array<i64: 1, 1, 1>, scalar_prefetch = 0 : i64, scratch_operands = 0 : i64, tpu.core_type = #tpu.core_type<tc>, window_params = [{transform_indices = @transform_0, window_bounds = array<i64: 8, 128>}, {transform_indices = @transform_1, window_bounds = array<i64: 128, 128>}, {transform_indices = @transform_2, window_bounds = array<i64: 1, 128>}, {transform_indices = @transform_3, window_bounds = array<i64: 8, 128>}]} {
    %c0 = arith.constant 0 : index
    %c0_0 = arith.constant 0 : index
    %0 = vector.load %arg3[%c0, %c0_0] : memref<8x128xf32, #tpu.memory_space<vmem>>, vector<8x128xf32>
    %c0_1 = arith.constant 0 : index
    %c0_2 = arith.constant 0 : index
    %1 = vector.load %arg4[%c0_1, %c0_2] : memref<128x128xf32, #tpu.memory_space<vmem>>, vector<128x128xf32>
    %cst = arith.constant dense<0.000000e+00> : vector<8x128xf32>
    %2 = tpu.matmul %0, %1, %cst {dimension_numbers = #tpu.dot_dimension_numbers<[1], [0], [0], [1], [0, 0, 1, 1], [], []>} : vector<8x128xf32>, vector<128x128xf32>, vector<8x128xf32> -> vector<8x128xf32>
    %c0_i32 = arith.constant 0 : i32
    %3 = arith.cmpi eq, %arg2, %c0_i32 : i32
    %4 = arith.extui %3 : i1 to i32
    %c0_i32_3 = arith.constant 0 : i32
    %5 = arith.cmpi ne, %4, %c0_i32_3 : i32
    scf.if %5 {
      %c0_6 = arith.constant 0 : index
      %c0_7 = arith.constant 0 : index
      %9 = vector.load %arg5[%c0_6, %c0_7] : memref<1x128xf32, #tpu.memory_space<vmem>>, vector<1x128xf32>
      %10 = vector.broadcast %9 : vector<1x128xf32> to vector<8x128xf32>
      %11 = arith.addf %10, %2 : vector<8x128xf32>
      %c0_8 = arith.constant 0 : index
      %c0_9 = arith.constant 0 : index
      %12 = vector.load %arg6[%c0_8, %c0_9] : memref<8x128xf32, #tpu.memory_space<vmem>>, vector<8x128xf32>
      tpu.vector_store %arg6[%c0_8, %c0_9], %11 {strides = array<i32>} : memref<8x128xf32, #tpu.memory_space<vmem>>, vector<8x128xf32>,
    } else {
    }
    %c0_i32_4 = arith.constant 0 : i32
    %6 = arith.cmpi sgt, %arg2, %c0_i32_4 : i32
    %7 = arith.extui %6 : i1 to i32
    %c0_i32_5 = arith.constant 0 : i32
    %8 = arith.cmpi ne, %7, %c0_i32_5 : i32
    scf.if %8 {
      %c0_6 = arith.constant 0 : index
      %c0_7 = arith.constant 0 : index
      %9 = vector.load %arg6[%c0_6, %c0_7] : memref<8x128xf32, #tpu.memory_space<vmem>>, vector<8x128xf32>
      %10 = arith.addf %9, %2 : vector<8x128xf32>
      %c0_8 = arith.constant 0 : index
      %c0_9 = arith.constant 0 : index
      %11 = vector.load %arg6[%c0_8, %c0_9] : memref<8x128xf32, #tpu.memory_space<vmem>>, vector<8x128xf32>
      tpu.vector_store %arg6[%c0_8, %c0_9], %10 {strides = array<i32>} : memref<8x128xf32, #tpu.memory_space<vmem>>, vector<8x128xf32>,
    } else {
    }
    return
  }
  func.func @transform_0(%arg0: i32, %arg1: i32, %arg2: i32) -> (i32, i32) {
    %c0_i32 = arith.constant 0 : i32
    return %arg0, %arg2 : i32, i32
  }
  func.func @transform_1(%arg0: i32, %arg1: i32, %arg2: i32) -> (i32, i32) {
    %c0_i32 = arith.constant 0 : i32
    return %arg2, %arg1 : i32, i32
  }
  func.func @transform_2(%arg0: i32, %arg1: i32, %arg2: i32) -> (i32, i32) {
    %c0_i32 = arith.constant 0 : i32
    %c0_i32_0 = arith.constant 0 : i32
    return %c0_i32, %arg1 : i32, i32
  }
  func.func @transform_3(%arg0: i32, %arg1: i32, %arg2: i32) -> (i32, i32) {
    %c0_i32 = arith.constant 0 : i32
    return %arg0, %arg1 : i32, i32
  }
}

</mosaic_0001>

<llo_original>
// kernel: _tiled_matmul.1
$region0: #{_tiled_matmul.1}
  #allocation0 [shape = 'u32[]', space=smem, size = 0x4, offset = 0x4, fixed_abs, tag = 'smem constant byte address 0x4 - core index']
  #allocation1 [shape = 'u32[144,128]{1,0:T(1,128)}', space=vmem, size = 0x12000, scoped, tag = 'internal scratch']
  %s0 = inlined_call_operand.hbm [shape: f32[8,128], index: 0, kind: input, shape index: {}]
  %s1 = inlined_call_operand.hbm [shape: f32[128,128], index: 1, kind: input, shape index: {}]
  %s2 = inlined_call_operand.vmem [shape: f32[1,128], index: 2, kind: input, shape index: {}]
  %s3 = inlined_call_operand.hbm [shape: f32[8,128], index: 3, kind: output, shape index: {}]
  %s4 = sld [smem:[#allocation0]]
  $region38: #{_tiled_matmul.1} parent=0
    _
  %s6 = ssub.s32 1, %s4
  %s7 = scalar_select 0, %s6, %s4
  $region1: #{_tiled_matmul.1} parent=0
    #allocation2 [shape = 'u8[4096]{0}', space=vmem, size = 0x1000, scoped, tag = 'input window, operand 0, single buffered']
    #allocation3 [shape = 's32[1]{0}', space=sflag, size = 0x4, scoped, tag = 'scoped memory for _tiled_matmul.1']
    #allocation4 [shape = 's32[1]{0}', space=sflag, size = 0x4, scoped, tag = 'scoped memory for _tiled_matmul.1']
    #allocation5 [shape = 'u8[65536]{0}', space=vmem, size = 0x10000, scoped, tag = 'input window, operand 1, single buffered']
    #allocation6 [shape = 's32[1]{0}', space=sflag, size = 0x4, scoped, tag = 'scoped memory for _tiled_matmul.1']
    #allocation7 [shape = 'u8[4096]{0}', space=vmem, size = 0x1000, scoped, tag = 'output window, operand 0, single buffered']
    %8 = vsyncpa [#allocation3], 0
    %9 = vsyncpa [#allocation6], 0
    %10 = vsyncpa [#allocation4], 0
    // Predicated region
    $region2: #{_tiled_matmul.1} parent=1 // pred_check
      _
    $region3: #{_tiled_matmul.1} parent=1 // pred_check_branch
      %12 = sbr.rel (0) target = $region5
    $region4: #{_tiled_matmul.1} parent=1 // pred_region
      %s14 = ssub.s32 128, 128
      %15 = vsyncadd [#allocation3], %s14
      %s17 = sshll.u32 [#allocation2], 4
      %s18 = int_to_ptr.vmem [resolvable:$true] %s17
      %20 = dma.hbm_to_vmem [thread:$0]  %s0, 128, %s18, [#allocation3]
    $region5: #{_tiled_matmul.1} parent=1 // pred_fallthru
      _
    // Predicated region
    $region6: #{_tiled_matmul.1} parent=1 // pred_check
      _
    $region7: #{_tiled_matmul.1} parent=1 // pred_check_branch
      %22 = sbr.rel (0) target = $region9
    $region8: #{_tiled_matmul.1} parent=1 // pred_region
      %s24 = ssub.s32 2048, 2048
      %25 = vsyncadd [#allocation6], %s24
      %s26 = sshll.u32 [#allocation5], 4
      %s27 = int_to_ptr.vmem [resolvable:$true] %s26
      %32 = dma.hbm_to_vmem [thread:$0]  %s1, 2048, %s27, [#allocation6], 128, 128, 8
    $region9: #{_tiled_matmul.1} parent=1 // pred_fallthru
      _
    // Predicated region
    $region10: #{_tiled_matmul.1} parent=1 // pred_check
      _
    $region11: #{_tiled_matmul.1} parent=1 // pred_check_branch
      %34 = sbr.rel (0) target = $region13
    $region12: #{_tiled_matmul.1} parent=1 // pred_region
      _
    $region13: #{_tiled_matmul.1} parent=1 // pred_fallthru
      _
    // Predicated region
    $region14: #{_tiled_matmul.1} parent=1 // pred_check
      _
    $region15: #{_tiled_matmul.1} parent=1 // pred_check_branch
      %36 = sbr.rel (0) target = $region17
    $region16: #{_tiled_matmul.1} parent=1 // pred_region
      %37 = dma.done [#allocation3], 128
    $region17: #{_tiled_matmul.1} parent=1 // pred_fallthru
      _
    // Predicated region
    $region18: #{_tiled_matmul.1} parent=1 // pred_check
      _
    $region19: #{_tiled_matmul.1} parent=1 // pred_check_branch
      %39 = sbr.rel (0) target = $region21
    $region20: #{_tiled_matmul.1} parent=1 // pred_region
      %40 = dma.done [#allocation6], 2048
    $region21: #{_tiled_matmul.1} parent=1 // pred_fallthru
      _
    %v41 = vld [vmem:[#allocation2] sm:$0xff]
    %v42 = vld [vmem:[#allocation5] sm:$0xff]
    %v43 = vld [vmem:[#allocation5 + $0x8] sm:$0xff]
    %v44 = vld [vmem:[#allocation5 + $0x10] sm:$0xff]
    %v45 = vld [vmem:[#allocation5 + $0x18] sm:$0xff]
    %v46 = vld [vmem:[#allocation5 + $0x20] sm:$0xff]
    %v47 = vld [vmem:[#allocation5 + $0x28] sm:$0xff]
    %v48 = vld [vmem:[#allocation5 + $0x30] sm:$0xff]
    %v49 = vld [vmem:[#allocation5 + $0x38] sm:$0xff]
    %v50 = vld [vmem:[#allocation5 + $0x40] sm:$0xff]
    %v51 = vld [vmem:[#allocation5 + $0x48] sm:$0xff]
    %v52 = vld [vmem:[#allocation5 + $0x50] sm:$0xff]
    %v53 = vld [vmem:[#allocation5 + $0x58] sm:$0xff]
    %v54 = vld [vmem:[#allocation5 + $0x60] sm:$0xff]
    %v55 = vld [vmem:[#allocation5 + $0x68] sm:$0xff]
    %v56 = vld [vmem:[#allocation5 + $0x70] sm:$0xff]
    %v57 = vld [vmem:[#allocation5 + $0x78] sm:$0xff]
    %58 = vmatprep.subr.mxu0 0.0
    %59 = vmatpush1.msra.mxu0 %v57
    %60 = vmatprep.subr.mxu0 0.0
    %61 = vmatpush1.msra.mxu0 %v56
    %62 = vmatprep.subr.mxu0 0.0
    %63 = vmatpush1.msra.mxu0 %v55
    %64 = vmatprep.subr.mxu0 0.0
    %65 = vmatpush1.msra.mxu0 %v54
    %66 = vmatprep.subr.mxu0 0.0
    %67 = vmatpush1.msra.mxu0 %v53
    %68 = vmatprep.subr.mxu0 0.0
    %69 = vmatpush1.msra.mxu0 %v52
    %70 = vmatprep.subr.mxu0 0.0
    %71 = vmatpush1.msra.mxu0 %v51
    %72 = vmatprep.subr.mxu0 0.0
    %73 = vmatpush1.msra.mxu0 %v50
    %74 = vmatprep.subr.mxu0 0.0
    %75 = vmatpush1.msra.mxu0 %v49
    %76 = vmatprep.subr.mxu0 0.0
    %77 = vmatpush1.msra.mxu0 %v48
    %78 = vmatprep.subr.mxu0 0.0
    %79 = vmatpush1.msra.mxu0 %v47
    %80 = vmatprep.subr.mxu0 0.0
    %81 = vmatpush1.msra.mxu0 %v46
    %82 = vmatprep.subr.mxu0 0.0
    %83 = vmatpush1.msra.mxu0 %v45
    %84 = vmatprep.subr.mxu0 0.0
    %85 = vmatpush1.msra.mxu0 %v44
    %86 = vmatprep.subr.mxu0 0.0
    %87 = vmatpush1.msra.mxu0 %v43
    %88 = vmatprep.subr.mxu0 0.0
    %89 = vmatpush1.msra.mxu0 %v42
    %90 = vmatprep.subr.mxu0 0.0
    %91 = vmatpush2.msra.mxu0 0.0
    %92 = vmatprep.subr.mxu0 0.0
    %93 = vmatpush2.msra.mxu0 0.0
    %94 = vmatprep.subr.mxu0 0.0
    %95 = vmatpush2.msra.mxu0 0.0
    %96 = vmatprep.subr.mxu0 0.0
    %97 = vmatpush2.msra.mxu0 0.0
    %98 = vmatprep.subr.mxu0 0.0
    %99 = vmatpush2.msra.mxu0 0.0
    %100 = vmatprep.subr.mxu0 0.0
    %101 = vmatpush2.msra.mxu0 0.0
    %102 = vmatprep.subr.mxu0 0.0
    %103 = vmatpush2.msra.mxu0 0.0
    %104 = vmatprep.subr.mxu0 0.0
    %105 = vmatpush2.msra.mxu0 0.0
    %106 = vmatprep.subr.mxu0 0.0
    %107 = vmatpush2.msra.mxu0 0.0
    %108 = vmatprep.subr.mxu0 0.0
    %109 = vmatpush2.msra.mxu0 0.0
    %110 = vmatprep.subr.mxu0 0.0
    %111 = vmatpush2.msra.mxu0 0.0
    %112 = vmatprep.subr.mxu0 0.0
    %113 = vmatpush2.msra.mxu0 0.0
    %114 = vmatprep.subr.mxu0 0.0
    %115 = vmatpush2.msra.mxu0 0.0
    %116 = vmatprep.subr.mxu0 0.0
    %117 = vmatpush2.msra.mxu0 0.0
    %118 = vmatprep.subr.mxu0 0.0
    %119 = vmatpush2.msra.mxu0 0.0
    %120 = vmatprep.subr.mxu0 0.0
    %121 = vmatpush2.msra.mxu0 0.0
    %122 = vmatprep.mubr.f32.mxu0 0.0
    %123 = vmatmul.mubr.f32.gmra.mxu0 %v41
    %v124 = vpop.f32.mrf.mxu0
    %v125 = vadd.f32 0.0, %v124
    %v126 = vpop.f32.mrf.mxu0
    %127 = vdwg.mxu0
    %p128 = scmp.eq.s32.totalorder 0, 0
    // Predicated region
    $region22: #{_tiled_matmul.1} parent=1 // pred_check
      %p129 = pneg %p128
    $region23: #{_tiled_matmul.1} parent=1 // pred_check_branch
      %131 = sbr.rel (%p129) target = $region25
    $region24: #{_tiled_matmul.1} parent=1 // pred_region
      %v132 = vld [vmem:[%s2] sm:$0x1]
      %v134 = vlaneseq
      %v135 = vshrl.u32 %v134, 7
      %v136 = vsub.s32 0, %v135
      %v137 = vrot.slane %v132, %v136
      %v139 = vadd.f32 %v137, %v125
      %140 = vst [vmem:[#allocation7] sm:$0xff] %v139
    $region25: #{_tiled_matmul.1} parent=1 // pred_fallthru
      _
    %p141 = scmp.gt.s32.totalorder 0, 0
    // Predicated region
    $region26: #{_tiled_matmul.1} parent=1 // pred_check
      %p142 = pneg %p141
    $region27: #{_tiled_matmul.1} parent=1 // pred_check_branch
      %144 = sbr.rel (%p142) target = $region29
    $region28: #{_tiled_matmul.1} parent=1 // pred_region
      %v145 = vld [vmem:[#allocation7] sm:$0xff]
      %v146 = vadd.f32 %v145, %v125
      %147 = vst [vmem:[#allocation7] sm:$0xff] %v146
    $region29: #{_tiled_matmul.1} parent=1 // pred_fallthru
      _
    // Predicated region
    $region30: #{_tiled_matmul.1} parent=1 // pred_check
      _
    $region31: #{_tiled_matmul.1} parent=1 // pred_check_branch
      %149 = sbr.rel (0) target = $region33
    $region32: #{_tiled_matmul.1} parent=1 // pred_region
      %s151 = ssub.s32 128, 128
      %152 = vsyncadd [#allocation4], %s151
      %s154 = sshll.u32 [#allocation7], 4
      %s155 = int_to_ptr.vmem [resolvable:$true] %s154
      %157 = dma.vmem_to_hbm [thread:$0]  %s155, 128, %s3, [#allocation4]
    $region33: #{_tiled_matmul.1} parent=1 // pred_fallthru
      _
    // Predicated region
    $region34: #{_tiled_matmul.1} parent=1 // pred_check
      _
    $region35: #{_tiled_matmul.1} parent=1 // pred_check_branch
      %159 = sbr.rel (0) target = $region37
    $region36: #{_tiled_matmul.1} parent=1 // pred_region
      %160 = dma.done [#allocation4], 128
    $region37: #{_tiled_matmul.1} parent=1 // pred_fallthru
      _
    %161 = vsyncpa [#allocation3], 1
    %162 = vsyncpa [#allocation6], 1
    %163 = vsyncpa [#allocation4], 1

</llo_original>
